<compile_context>
chip_gen: v5e
topology: v5e:2x2
jax: 0.10.0
libtpu: 0.0.40
codegen_flags: <defaults>
</compile_context>

<pallas_src>
import jax
import jax.numpy as jnp
from jax import lax
from jax.experimental import pallas as pl
from jax.experimental.pallas import tpu as pltpu


def _round_up(x, mult):
    return ((x + mult - 1) // mult) * mult


def _svm_transform_kernel(xtr_ref, xte_ref, ntr_ref, nte_ref, w_ref, bias_ref,
                          out_ref, acc_ref):
    """One (output-tile j, reduction-tile k) grid step.

    xtr_ref  : VMEM (tn, d_pad)  mxu dtype   training rows  -> output columns of this j-tile
    xte_ref  : VMEM (tm, d_pad)  mxu dtype   test rows, pre-scaled by 2*gamma (reduction tile k)
    ntr_ref  : VMEM (1, tn)      f32         gamma * ||X_train||^2   (host precomputed)
    nte_ref  : VMEM (tm, 1)      f32         gamma * ||X_test||^2    (host precomputed)
    w_ref    : VMEM (P_pad, tm)  mxu dtype   W = alpha * Y, sliced along the reduction axis
    bias_ref : VMEM (P_pad, 1)   f32
    out_ref  : VMEM (P_pad, tn)  f32         output tile (constant block across k)
    acc_ref  : VMEM (P_pad, tn)  f32         scratch accumulator
    """
    k = pl.program_id(1)

    @pl.when(k == 0)
    def _init():
        acc_ref[...] = jnp.zeros_like(acc_ref)

    # Cross term on the MXU (2*gamma folded into X_test on the host):
    #   cross[a, b] = 2*gamma * <x_test[a], x_train[b]>
    cross = lax.dot_general(xte_ref[...], xtr_ref[...], (((1,), (1,)), ((), ())),
                            preferred_element_type=jnp.float32)          # (tm, tn) f32

    # t = -gamma * ||x_test - x_train||^2 <= 0.  min(., 0) clamps FP cancellation and
    # fuses the negation (one fewer full (tm, tn) VPU pass than max()+negate).
    t = jnp.minimum(cross - nte_ref[...] - ntr_ref[...], 0.0)
    # exp in the MXU dtype: bf16 EUP on v6e/v7x, and the Gram tile is produced directly
    # in the dtype consumed by the second matmul (no separate cast pass).
    kmat = jnp.exp(t.astype(w_ref.dtype))                                # (tm, tn)

    # (alpha * Y) tile @ Gram tile, accumulated in f32 on the MXU.
    acc_ref[...] += jnp.dot(w_ref[...], kmat, preferred_element_type=jnp.float32)

    @pl.when(k == pl.num_programs(1) - 1)
    def _finalize():
        out_ref[...] = acc_ref[...] + bias_ref[...]


def svm_transform(X_train, X_test, alpha, Y, bias, gamma,
                  *, tile_n=None, tile_m=None, use_bf16_mxu=True):
    """Pallas wrapper for SVM.transform (eval-mode forward, RBF kernel)."""
    X_train = jnp.asarray(X_train, jnp.float32)
    X_test = jnp.asarray(X_test, jnp.float32)
    alpha = jnp.asarray(alpha, jnp.float32)
    Y = jnp.asarray(Y, jnp.float32)
    bias = jnp.asarray(bias, jnp.float32)
    gamma = jnp.asarray(gamma, jnp.float32)

    n, d = X_train.shape
    m, d2 = X_test.shape
    P = alpha.shape[0]
    assert d2 == d
    # `(alpha*Y) @ K` contracts alpha's train axis against K's test axis; it is only
    # well-formed (and only mathematically meaningful) when m_test == n_train.
    assert m == n, "SVM.transform requires m_test == n_train (fit_transform scenario)"
    assert alpha.shape == (P, n) and Y.shape == (P, n) and bias.shape == (P, 1)

    mxu_dtype = jnp.bfloat16 if use_bf16_mxu else jnp.float32
    mxu_bytes = 2 if use_bf16_mxu else 4

    d_pad = _round_up(d, 128)
    P_pad = _round_up(P, 16)          # 16 keeps sub-32-bit sublane packing happy too

    # ---- per-generation VMEM budget --------------------------------------------------
    try:
        vmem_cap = int(pltpu.get_tpu_info().vmem_capacity_bytes)
    except Exception:
        vmem_cap = 64 << 20           # conservative fallback (v7x per-TC size)
    vmem_budget = (vmem_cap * 7) // 10                       # tile-selection budget
    vmem_limit = max(vmem_budget, vmem_cap - (16 << 20))     # actual Mosaic limit (headroom)

    # ---- tile selection: big tiles, 128/256-aligned, clamped to problem + budget ------
    big = 2048 if vmem_cap >= (96 << 20) else 1024            # v5e/v6e vs v7x-class VMEM
    tn = tile_n if tile_n is not None else big
    tm = tile_m if tile_m is not None else big
    tn = max(128, min(_round_up(tn, 128), _round_up(n, 256)))
    tm = max(128, min(_round_up(tm, 128), _round_up(m, 256)))

    def _vmem_need(tn_, tm_):
        return (2 * tn_ * d_pad * mxu_bytes        # X_train tile (double-buffered)
                + 2 * tm_ * d_pad * mxu_bytes      # X_test tile
                + 2 * P_pad * tm_ * mxu_bytes      # W tile
                + 2 * (tm_ + tn_ + P_pad) * 4      # norms + bias
                + 3 * P_pad * tn_ * 4              # out (x2) + accumulator
                + 5 * tm_ * tn_ * 4)               # live (tm, tn) temporaries (conservative)

    while _vmem_need(tn, tm) > vmem_budget and max(tn, tm) > 256:
        if tn >= tm:
            tn = max(256, _round_up(tn // 2, 128))
        else:
            tm = max(256, _round_up(tm // 2, 128))

    # Feed both TensorCores on 2-TC parts (v7x): give the "parallel" output axis >= 2 tiles.
    if tile_n is None and tn >= 512 and _round_up(n, tn) // tn < 2:
        tn = max(256, _round_up(tn // 2, 128))

    n_pad = _round_up(n, tn)
    m_pad = _round_up(m, tm)

    # ---- host-side precompute (exact-in-f32 norms, folded gamma, W = alpha*Y) ---------
    # Zero padding is exact: zero feature columns change neither norms nor the cross
    # term, zero W rows/cols contribute nothing, padded outputs are sliced off.
    Xtr_p = jnp.zeros((n_pad, d_pad), jnp.float32).at[:n, :d].set(X_train)
    Xte_p = jnp.zeros((m_pad, d_pad), jnp.float32).at[:m, :d].set(X_test)
    ntr = (gamma * jnp.sum(Xtr_p * Xtr_p, axis=-1))[None, :]            # (1, n_pad) f32
    nte = (gamma * jnp.sum(Xte_p * Xte_p, axis=-1))[:, None]            # (m_pad, 1) f32
    Xtr_mx = Xtr_p.astype(mxu_dtype)
    Xte_mx = (Xte_p * (2.0 * gamma)).astype(mxu_dtype)                  # fold 2*gamma in
    W = (jnp.zeros((P_pad, m_pad), jnp.float32)
         .at[:P, :n].set(alpha * Y)).astype(mxu_dtype)
    Bp = jnp.zeros((P_pad, 1), jnp.float32).at[:P, :].set(bias)

    grid = (n_pad // tn, m_pad // tm)   # (output tiles "parallel", reduction tiles last)

    in_specs = [
        pl.BlockSpec((tn, d_pad), lambda j, k: (j, 0)),      # X_train tile
        pl.BlockSpec((tm, d_pad), lambda j, k: (k, 0)),      # X_test tile (2*gamma folded)
        pl.BlockSpec((1, tn), lambda j, k: (0, j)),          # gamma*||X_train||^2
        pl.BlockSpec((tm, 1), lambda j, k: (k, 0)),          # gamma*||X_test||^2
        pl.BlockSpec((P_pad, tm), lambda j, k: (0, k)),      # W = alpha*Y tile
        pl.BlockSpec((P_pad, 1), lambda j, k: (0, 0)),       # bias (whole)
    ]
    out_specs = pl.BlockSpec((P_pad, tn), lambda j, k: (0, j))
    scratch_shapes = [pltpu.VMEM((P_pad, tn), jnp.float32)]

    cost = pl.CostEstimate(
        flops=int(2 * m_pad * n_pad * d_pad                  # distance cross matmul
                  + 2 * P_pad * m_pad * n_pad                # W @ K
                  + 5 * m_pad * n_pad),                      # elementwise on Gram tiles
        transcendentals=int(m_pad * n_pad),
        bytes_accessed=int(n_pad * d_pad * mxu_bytes
                           + grid[0] * m_pad * d_pad * mxu_bytes
                           + grid[0] * P_pad * m_pad * mxu_bytes
                           + 4 * (m_pad + n_pad + P_pad * (1 + n_pad))),
    )

    out_pad = pl.pallas_call(
        _svm_transform_kernel,
        out_shape=jax.ShapeDtypeStruct((P_pad, n_pad), jnp.float32),
        grid_spec=pltpu.PrefetchScalarGridSpec(
            num_scalar_prefetch=0,
            grid=grid,
            in_specs=in_specs,
            out_specs=out_specs,
            scratch_shapes=scratch_shapes),
        compiler_params=pltpu.CompilerParams(
            dimension_semantics=("parallel", "arbitrary"),
            vmem_limit_bytes=int(vmem_limit)),
        cost_estimate=cost,
    )(Xtr_mx, Xte_mx, ntr, nte, W, Bp)

    return out_pad[:P, :n]


def svm_transform_ref(X_train, X_test, alpha, Y, bias, gamma):
    """Pure-JAX reference replicating the PyTorch semantics exactly (diff-squared form)."""
    diff = X_train[None, :, :] - X_test[:, None, :]      # (m, n, d)
    K = jnp.exp(-gamma * jnp.sum(diff ** 2, axis=-1))    # (m, n)
    return (alpha * Y) @ K + bias                        # (P, n)


def _make_inputs(key, n, d, P, C=1.0):
    k1, k2, k3, k4 = jax.random.split(key, 4)
    X = jax.random.normal(k1, (n, d), dtype=jnp.float32)
    labels = jax.random.randint(k2, (n,), 0, P)
    Y = (2.0 * (labels[None, :] == jnp.arange(P)[:, None]).astype(jnp.float32) - 1.0)
    alpha = jax.random.uniform(k3, (P, n), jnp.float32, 0.0, C)
    bias = jax.random.normal(k4, (P, 1), dtype=jnp.float32)
    # gamma='scale' rule from configure_gamma: 1 / (n_features * X.var())
    gamma = (1.0 / (d * jnp.var(X))).astype(jnp.float32)
    return X, alpha, Y, bias, gamma


def _check(name, out, ref, tol):
    scale = float(jnp.max(jnp.abs(ref))) + 1e-6
    err = float(jnp.max(jnp.abs(out - ref)))
    assert err <= tol * scale, f"{name}: max abs err {err:.3e} exceeds {tol}*{scale:.3e}"


if __name__ == "__main__":
    key = jax.random.PRNGKey(0)
    kA, kB = jax.random.split(key)

    # Case 1: tiny shapes matching the module's fit_transform path (single-tile grid).
    X1, a1, Y1, b1, g1 = _make_inputs(kA, n=16, d=8, P=3)
    ref1 = svm_transform_ref(X1, X1, a1, Y1, b1, g1)
    out1 = svm_transform(X1, X1, a1, Y1, b1, g1)                        # bf16 MXU default
    jax.block_until_ready(out1)
    assert out1.shape == (3, 16)
    _check("case1/bf16", out1, ref1, tol=5e-2)
    out1f = svm_transform(X1, X1, a1, Y1, b1, g1, use_bf16_mxu=False)   # exact f32 path
    jax.block_until_ready(out1f)
    _check("case1/f32", out1f, ref1, tol=5e-3)

    # Case 2: multi-tile grid (3 output tiles x 3 reduction tiles) with padded P/d/n.
    X2, a2, Y2, b2, g2 = _make_inputs(kB, n=320, d=40, P=5)
    ref2 = svm_transform_ref(X2, X2, a2, Y2, b2, g2)
    out2 = svm_transform(X2, X2, a2, Y2, b2, g2, tile_n=128, tile_m=128)
    jax.block_until_ready(out2)
    assert out2.shape == (5, 320)
    _check("case2/bf16", out2, ref2, tol=5e-2)
    out2f = svm_transform(X2, X2, a2, Y2, b2, g2, tile_n=128, tile_m=128,
                          use_bf16_mxu=False)
    jax.block_until_ready(out2f)
    _check("case2/f32", out2f, ref2, tol=5e-3)

    # Case 3: default auto-tiling path (exercises per-generation tile/VMEM selection
    # and the >=2-output-tile split for 2-TensorCore parts).
    out3 = svm_transform(X2, X2, a2, Y2, b2, g2)
    jax.block_until_ready(out3)
    _check("case3/auto", out3, ref2, tol=5e-2)

    print("KERNEL_OK")
</pallas_src>

<mosaic_0001>
module attributes {stable_mosaic.version = 11 : i64} {
  func.func @_svm_transform_kernel(%arg0: i32, %arg1: i32, %arg2: memref<256x128xbf16, #tpu.memory_space<vmem>>, %arg3: memref<256x128xbf16, #tpu.memory_space<vmem>>, %arg4: memref<1x256xf32, #tpu.memory_space<vmem>>, %arg5: memref<256x1xf32, #tpu.memory_space<vmem>>, %arg6: memref<16x256xbf16, #tpu.memory_space<vmem>>, %arg7: memref<16x1xf32, #tpu.memory_space<vmem>>, %arg8: memref<16x256xf32, #tpu.memory_space<vmem>>, %arg9: memref<16x256xf32, #tpu.memory_space<vmem>>) attributes {dimension_semantics = [#tpu.dimension_semantics<parallel>, #tpu.dimension_semantics<arbitrary>], iteration_bounds = array<i64: 1, 1>, scalar_prefetch = 0 : i64, scratch_operands = 1 : i64, tpu.core_type = #tpu.core_type<tc>, window_params = [{transform_indices = @transform_0, window_bounds = array<i64: 256, 128>}, {transform_indices = @transform_1, window_bounds = array<i64: 256, 128>}, {transform_indices = @transform_2, window_bounds = array<i64: 1, 256>}, {transform_indices = @transform_3, window_bounds = array<i64: 256, 1>}, {transform_indices = @transform_4, window_bounds = array<i64: 16, 256>}, {pipeline_mode = #tpu.pipeline_mode<synchronous>, transform_indices = @transform_5, window_bounds = array<i64: 16, 1>}, {transform_indices = @transform_6, window_bounds = array<i64: 16, 256>}]} {
    %c0_i32 = arith.constant 0 : i32
    %0 = arith.cmpi eq, %arg1, %c0_i32 : i32
    %1 = arith.extui %0 : i1 to i32
    %c0_i32_0 = arith.constant 0 : i32
    %2 = arith.cmpi ne, %1, %c0_i32_0 : i32
    scf.if %2 {
      %cst_18 = arith.constant 0.000000e+00 : f32
      %24 = vector.broadcast %cst_18 : f32 to vector<16x256xf32>
      %c0_19 = arith.constant 0 : index
      %c0_20 = arith.constant 0 : index
      %25 = vector.load %arg9[%c0_19, %c0_20] : memref<16x256xf32, #tpu.memory_space<vmem>>, vector<16x256xf32>
      tpu.vector_store %arg9[%c0_19, %c0_20], %24 {strides = array<i32>} : memref<16x256xf32, #tpu.memory_space<vmem>>, vector<16x256xf32>,
    } else {
    }
    %c0 = arith.constant 0 : index
    %c0_1 = arith.constant 0 : index
    %3 = vector.load %arg3[%c0, %c0_1] : memref<256x128xbf16, #tpu.memory_space<vmem>>, vector<256x128xbf16>
    %c0_2 = arith.constant 0 : index
    %c0_3 = arith.constant 0 : index
    %4 = vector.load %arg2[%c0_2, %c0_3] : memref<256x128xbf16, #tpu.memory_space<vmem>>, vector<256x128xbf16>
    %cst = arith.constant dense<0.000000e+00> : vector<256x256xf32>
    %5 = tpu.matmul %3, %4, %cst {dimension_numbers = #tpu.dot_dimension_numbers<[1], [1], [0], [0], [0, 0, 1, 0], [], []>} : vector<256x128xbf16>, vector<256x128xbf16>, vector<256x256xf32> -> vector<256x256xf32>
    %c0_4 = arith.constant 0 : index
    %c0_5 = arith.constant 0 : index
    %6 = vector.load %arg5[%c0_4, %c0_5] : memref<256x1xf32, #tpu.memory_space<vmem>>, vector<256x1xf32>
    %7 = vector.broadcast %6 : vector<256x1xf32> to vector<256x256xf32>
    %8 = arith.subf %5, %7 : vector<256x256xf32>
    %c0_6 = arith.constant 0 : index
    %c0_7 = arith.constant 0 : index
    %9 = vector.load %arg4[%c0_6, %c0_7] : memref<1x256xf32, #tpu.memory_space<vmem>>, vector<1x256xf32>
    %10 = vector.broadcast %9 : vector<1x256xf32> to vector<256x256xf32>
    %11 = arith.subf %8, %10 : vector<256x256xf32>
    %cst_8 = arith.constant 0.000000e+00 : f32
    %12 = vector.broadcast %cst_8 : f32 to vector<256x256xf32>
    %13 = arith.minimumf %11, %12 : vector<256x256xf32>
    %14 = arith.truncf %13 : vector<256x256xf32> to vector<256x256xbf16>
    %15 = math.exp %14 : vector<256x256xbf16>
    %c0_9 = arith.constant 0 : index
    %c0_10 = arith.constant 0 : index
    %16 = vector.load %arg9[%c0_9, %c0_10] : memref<16x256xf32, #tpu.memory_space<vmem>>, vector<16x256xf32>
    %c0_11 = arith.constant 0 : index
    %c0_12 = arith.constant 0 : index
    %17 = vector.load %arg6[%c0_11, %c0_12] : memref<16x256xbf16, #tpu.memory_space<vmem>>, vector<16x256xbf16>
    %cst_13 = arith.constant dense<0.000000e+00> : vector<16x256xf32>
    %18 = tpu.matmul %17, %15, %cst_13 {dimension_numbers = #tpu.dot_dimension_numbers<[1], [0], [0], [1], [0, 0, 1, 1], [], []>} : vector<16x256xbf16>, vector<256x256xbf16>, vector<16x256xf32> -> vector<16x256xf32>
    %19 = arith.addf %16, %18 : vector<16x256xf32>
    %c0_14 = arith.constant 0 : index
    %c0_15 = arith.constant 0 : index
    %20 = vector.load %arg9[%c0_14, %c0_15] : memref<16x256xf32, #tpu.memory_space<vmem>>, vector<16x256xf32>
    tpu.vector_store %arg9[%c0_14, %c0_15], %19 {strides = array<i32>} : memref<16x256xf32, #tpu.memory_space<vmem>>, vector<16x256xf32>,
    %c0_i32_16 = arith.constant 0 : i32
    %21 = arith.cmpi eq, %arg1, %c0_i32_16 : i32
    %22 = arith.extui %21 : i1 to i32
    %c0_i32_17 = arith.constant 0 : i32
    %23 = arith.cmpi ne, %22, %c0_i32_17 : i32
    scf.if %23 {
      %c0_18 = arith.constant 0 : index
      %c0_19 = arith.constant 0 : index
      %24 = vector.load %arg9[%c0_18, %c0_19] : memref<16x256xf32, #tpu.memory_space<vmem>>, vector<16x256xf32>
      %c0_20 = arith.constant 0 : index
      %c0_21 = arith.constant 0 : index
      %25 = vector.load %arg7[%c0_20, %c0_21] : memref<16x1xf32, #tpu.memory_space<vmem>>, vector<16x1xf32>
      %26 = vector.broadcast %25 : vector<16x1xf32> to vector<16x256xf32>
      %27 = arith.addf %24, %26 : vector<16x256xf32>
      %c0_22 = arith.constant 0 : index
      %c0_23 = arith.constant 0 : index
      %28 = vector.load %arg8[%c0_22, %c0_23] : memref<16x256xf32, #tpu.memory_space<vmem>>, vector<16x256xf32>
      tpu.vector_store %arg8[%c0_22, %c0_23], %27 {strides = array<i32>} : memref<16x256xf32, #tpu.memory_space<vmem>>, vector<16x256xf32>,
    } else {
    }
    return
  }
  func.func @transform_0(%arg0: i32, %arg1: i32) -> (i32, i32) {
    %c0_i32 = arith.constant 0 : i32
    %c0_i32_0 = arith.constant 0 : i32
    return %arg0, %c0_i32 : i32, i32
  }
  func.func @transform_1(%arg0: i32, %arg1: i32) -> (i32, i32) {
    %c0_i32 = arith.constant 0 : i32
    %c0_i32_0 = arith.constant 0 : i32
    return %arg1, %c0_i32 : i32, i32
  }
  func.func @transform_2(%arg0: i32, %arg1: i32) -> (i32, i32) {
    %c0_i32 = arith.constant 0 : i32
    %c0_i32_0 = arith.constant 0 : i32
    return %c0_i32, %arg0 : i32, i32
  }
  func.func @transform_3(%arg0: i32, %arg1: i32) -> (i32, i32) {
    %c0_i32 = arith.constant 0 : i32
    %c0_i32_0 = arith.constant 0 : i32
    return %arg1, %c0_i32 : i32, i32
  }
  func.func @transform_4(%arg0: i32, %arg1: i32) -> (i32, i32) {
    %c0_i32 = arith.constant 0 : i32
    %c0_i32_0 = arith.constant 0 : i32
    return %c0_i32, %arg1 : i32, i32
  }
  func.func @transform_5(%arg0: i32, %arg1: i32) -> (i32, i32) {
    %c0_i32 = arith.constant 0 : i32
    %c0_i32_0 = arith.constant 0 : i32
    %c0_i32_1 = arith.constant 0 : i32
    return %c0_i32, %c0_i32_0 : i32, i32
  }
  func.func @transform_6(%arg0: i32, %arg1: i32) -> (i32, i32) {
    %c0_i32 = arith.constant 0 : i32
    %c0_i32_0 = arith.constant 0 : i32
    return %c0_i32, %arg0 : i32, i32
  }
}

</mosaic_0001>

<llo_original>
// kernel: tpu_custom_call.1
$region0: #{tpu_custom_call.1}
  #allocation0 [shape = 'u32[]', space=smem, size = 0x4, offset = 0x4, fixed_abs, tag = 'smem constant byte address 0x4 - core index']
  #allocation1 [shape = 'u32[72,128]{1,0:T(1,128)}', space=vmem, size = 0x9000, scoped, tag = 'internal scratch']
  #allocation2 [shape = 'f32[16,256]{1,0:T(8,128)}', space=vmem, size = 0x4000, scoped, tag = 'scratch operand']
  %s0 = inlined_call_operand.vmem [shape: bf16[256,128], index: 0, kind: input, shape index: {}]
  %s1 = inlined_call_operand.vmem [shape: bf16[256,128], index: 1, kind: input, shape index: {}]
  %s2 = inlined_call_operand.hbm [shape: f32[1,256], index: 2, kind: input, shape index: {}]
  %s3 = inlined_call_operand.vmem [shape: f32[256,1], index: 3, kind: input, shape index: {}]
  %s4 = inlined_call_operand.vmem [shape: bf16[16,256], index: 4, kind: input, shape index: {}]
  %s5 = inlined_call_operand.vmem [shape: f32[16,1], index: 5, kind: input, shape index: {}]
  %s6 = inlined_call_operand.hbm [shape: f32[16,256], index: 6, kind: output, shape index: {}]
  %s7 = sld [smem:[#allocation0]]
  $region46: #{tpu_custom_call.1} parent=0
    _
  %s9 = ssub.s32 1, %s7
  %s10 = scalar_select 0, %s9, %s7
  $region1: #{tpu_custom_call.1} parent=0
    #allocation3 [shape = 'u8[1024]{0}', space=vmem, size = 0x400, scoped, tag = 'input window, operand 2, single buffered']
    #allocation4 [shape = 's32[1]{0}', space=sflag, size = 0x4, scoped, tag = 'scoped memory for tpu_custom_call.1']
    #allocation5 [shape = 's32[1]{0}', space=sflag, size = 0x4, scoped, tag = 'scoped memory for tpu_custom_call.1']
    #allocation6 [shape = 'u8[16384]{0}', space=vmem, size = 0x4000, scoped, tag = 'output window, operand 0, single buffered']
    %11 = vsyncpa [#allocation4], 0
    %12 = vsyncpa [#allocation5], 0
    // Predicated region
    $region2: #{tpu_custom_call.1} parent=1 // pred_check
      _
    $region3: #{tpu_custom_call.1} parent=1 // pred_check_branch
      %14 = sbr.rel (0) target = $region5
    $region4: #{tpu_custom_call.1} parent=1 // pred_region
      _
    $region5: #{tpu_custom_call.1} parent=1 // pred_fallthru
      _
    // Predicated region
    $region6: #{tpu_custom_call.1} parent=1 // pred_check
      _
    $region7: #{tpu_custom_call.1} parent=1 // pred_check_branch
      %16 = sbr.rel (0) target = $region9
    $region8: #{tpu_custom_call.1} parent=1 // pred_region
      _
    $region9: #{tpu_custom_call.1} parent=1 // pred_fallthru
      _
    // Predicated region
    $region10: #{tpu_custom_call.1} parent=1 // pred_check
      _
    $region11: #{tpu_custom_call.1} parent=1 // pred_check_branch
      %18 = sbr.rel (0) target = $region13
    $region12: #{tpu_custom_call.1} parent=1 // pred_region
      %20 = vsyncadd [#allocation4], 0
      %s22 = sshll.u32 %s2, 4
      %s23 = int_to_ptr.hbm [resolvable:$true] %s22
      %s24 = sshll.u32 [#allocation3], 4
      %s25 = int_to_ptr.vmem [resolvable:$true] %s24
      %27 = dma.hbm_to_vmem [thread:$0]  %s23, 32, %s25, [#allocation4]
    $region13: #{tpu_custom_call.1} parent=1 // pred_fallthru
      _
    // Predicated region
    $region14: #{tpu_custom_call.1} parent=1 // pred_check
      _
    $region15: #{tpu_custom_call.1} parent=1 // pred_check_branch
      %29 = sbr.rel (0) target = $region17
    $region16: #{tpu_custom_call.1} parent=1 // pred_region
      _
    $region17: #{tpu_custom_call.1} parent=1 // pred_fallthru
      _
    // Predicated region
    $region18: #{tpu_custom_call.1} parent=1 // pred_check
      _
    $region19: #{tpu_custom_call.1} parent=1 // pred_check_branch
      %31 = sbr.rel (0) target = $region21
    $region20: #{tpu_custom_call.1} parent=1 // pred_region
      _
    $region21: #{tpu_custom_call.1} parent=1 // pred_fallthru
      _
    // Predicated region
    $region22: #{tpu_custom_call.1} parent=1 // pred_check
      _
    $region23: #{tpu_custom_call.1} parent=1 // pred_check_branch
      %33 = sbr.rel (0) target = $region25
    $region24: #{tpu_custom_call.1} parent=1 // pred_region
      _
    $region25: #{tpu_custom_call.1} parent=1 // pred_fallthru
      _
    // Predicated region
    $region26: #{tpu_custom_call.1} parent=1 // pred_check
      _
    $region27: #{tpu_custom_call.1} parent=1 // pred_check_branch
      %35 = sbr.rel (0) target = $region29
    $region28: #{tpu_custom_call.1} parent=1 // pred_region
      %37 = dma.done [#allocation4], 32
    $region29: #{tpu_custom_call.1} parent=1 // pred_fallthru
      _
    %p38 = scmp.eq.s32.totalorder 0, 0
    // Predicated region
    $region30: #{tpu_custom_call.1} parent=1 // pred_check
      %p39 = pneg %p38
    $region31: #{tpu_custom_call.1} parent=1 // pred_check_branch
      %41 = sbr.rel (%p39) target = $region33
    $region32: #{tpu_custom_call.1} parent=1 // pred_region
      %42 = vst [vmem:[#allocation2] sm:$0xff] 0.0
      %43 = vst [vmem:[#allocation2 + $0x8] sm:$0xff] 0.0
      %44 = vst [vmem:[#allocation2 + $0x10] sm:$0xff] 0.0
      %45 = vst [vmem:[#allocation2 + $0x18] sm:$0xff] 0.0
    $region33: #{tpu_custom_call.1} parent=1 // pred_fallthru
      _
    %v46 = vld [vmem:[%s1] sm:$0xf]
    %v47 = vld [vmem:[%s1 + $0x4] sm:$0xf]
    %v48 = vld [vmem:[%s1 + $0x8] sm:$0xf]
    %v49 = vld [vmem:[%s1 + $0xc] sm:$0xf]
    %v50 = vld [vmem:[%s1 + $0x10] sm:$0xf]
    %v51 = vld [vmem:[%s1 + $0x14] sm:$0xf]
    %v52 = vld [vmem:[%s1 + $0x18] sm:$0xf]
    %v53 = vld [vmem:[%s1 + $0x1c] sm:$0xf]
    %v54 = vld [vmem:[%s1 + $0x20] sm:$0xf]
    %v55 = vld [vmem:[%s1 + $0x24] sm:$0xf]
    %v56 = vld [vmem:[%s1 + $0x28] sm:$0xf]
    %v57 = vld [vmem:[%s1 + $0x2c] sm:$0xf]
    %v58 = vld [vmem:[%s1 + $0x30] sm:$0xf]
    %v59 = vld [vmem:[%s1 + $0x34] sm:$0xf]
    %v60 = vld [vmem:[%s1 + $0x38] sm:$0xf]
    %v61 = vld [vmem:[%s1 + $0x3c] sm:$0xf]
    %v62 = vld [vmem:[%s1 + $0x40] sm:$0xf]
    %v63 = vld [vmem:[%s1 + $0x44] sm:$0xf]
    %v64 = vld [vmem:[%s1 + $0x48] sm:$0xf]
    %v65 = vld [vmem:[%s1 + $0x4c] sm:$0xf]
    %v66 = vld [vmem:[%s1 + $0x50] sm:$0xf]
    %v67 = vld [vmem:[%s1 + $0x54] sm:$0xf]
    %v68 = vld [vmem:[%s1 + $0x58] sm:$0xf]
    %v69 = vld [vmem:[%s1 + $0x5c] sm:$0xf]
    %v70 = vld [vmem:[%s1 + $0x60] sm:$0xf]
    %v71 = vld [vmem:[%s1 + $0x64] sm:$0xf]
    %v72 = vld [vmem:[%s1 + $0x68] sm:$0xf]
    %v73 = vld [vmem:[%s1 + $0x6c] sm:$0xf]
    %v74 = vld [vmem:[%s1 + $0x70] sm:$0xf]
    %v75 = vld [vmem:[%s1 + $0x74] sm:$0xf]
    %v76 = vld [vmem:[%s1 + $0x78] sm:$0xf]
    %v77 = vld [vmem:[%s1 + $0x7c] sm:$0xf]
    %v78 = vld [vmem:[%s0] sm:$0xf]
    %v79 = vld [vmem:[%s0 + $0x4] sm:$0xf]
    %v80 = vld [vmem:[%s0 + $0x8] sm:$0xf]
    %v81 = vld [vmem:[%s0 + $0xc] sm:$0xf]
    %v82 = vld [vmem:[%s0 + $0x10] sm:$0xf]
    %v83 = vld [vmem:[%s0 + $0x14] sm:$0xf]
    %v84 = vld [vmem:[%s0 + $0x18] sm:$0xf]
    %v85 = vld [vmem:[%s0 + $0x1c] sm:$0xf]
    %v86 = vld [vmem:[%s0 + $0x20] sm:$0xf]
    %v87 = vld [vmem:[%s0 + $0x24] sm:$0xf]
    %v88 = vld [vmem:[%s0 + $0x28] sm:$0xf]
    %v89 = vld [vmem:[%s0 + $0x2c] sm:$0xf]
    %v90 = vld [vmem:[%s0 + $0x30] sm:$0xf]
    %v91 = vld [vmem:[%s0 + $0x34] sm:$0xf]
    %v92 = vld [vmem:[%s0 + $0x38] sm:$0xf]
    %v93 = vld [vmem:[%s0 + $0x3c] sm:$0xf]
    %v94 = vld [vmem:[%s0 + $0x40] sm:$0xf]
    %v95 = vld [vmem:[%s0 + $0x44] sm:$0xf]
    %v96 = vld [vmem:[%s0 + $0x48] sm:$0xf]
    %v97 = vld [vmem:[%s0 + $0x4c] sm:$0xf]
    %v98 = vld [vmem:[%s0 + $0x50] sm:$0xf]
    %v99 = vld [vmem:[%s0 + $0x54] sm:$0xf]
    %v100 = vld [vmem:[%s0 + $0x58] sm:$0xf]
    %v101 = vld [vmem:[%s0 + $0x5c] sm:$0xf]
    %v102 = vld [vmem:[%s0 + $0x60] sm:$0xf]
    %v103 = vld [vmem:[%s0 + $0x64] sm:$0xf]
    %v104 = vld [vmem:[%s0 + $0x68] sm:$0xf]
    %v105 = vld [vmem:[%s0 + $0x6c] sm:$0xf]
    %v106 = vld [vmem:[%s0 + $0x70] sm:$0xf]
    %v107 = vld [vmem:[%s0 + $0x74] sm:$0xf]
    %v108 = vld [vmem:[%s0 + $0x78] sm:$0xf]
    %v109 = vld [vmem:[%s0 + $0x7c] sm:$0xf]
    %v142 = vunpack.c.l.b16 %v46
    %v143 = vunpack.c.l.b16 %v47
    %v144 = vunpack.c.l.b16 %v48
    %v145 = vunpack.c.l.b16 %v49
    %v146 = vunpack.c.l.b16 %v50
    %v147 = vunpack.c.l.b16 %v51
    %v148 = vunpack.c.l.b16 %v52
    %v149 = vunpack.c.l.b16 %v53
    %v150 = vunpack.c.l.b16 %v54
    %v151 = vunpack.c.l.b16 %v55
    %v152 = vunpack.c.l.b16 %v56
    %v153 = vunpack.c.l.b16 %v57
    %v154 = vunpack.c.l.b16 %v58
    %v155 = vunpack.c.l.b16 %v59
    %v156 = vunpack.c.l.b16 %v60
    %v157 = vunpack.c.l.b16 %v61
    %v158 = vunpack.c.l.b16 %v62
    %v159 = vunpack.c.l.b16 %v63
    %v160 = vunpack.c.l.b16 %v64
    %v161 = vunpack.c.l.b16 %v65
    %v162 = vunpack.c.l.b16 %v66
    %v163 = vunpack.c.l.b16 %v67
    %v164 = vunpack.c.l.b16 %v68
    %v165 = vunpack.c.l.b16 %v69
    %v166 = vunpack.c.l.b16 %v70
    %v167 = vunpack.c.l.b16 %v71
    %v168 = vunpack.c.l.b16 %v72
    %v169 = vunpack.c.l.b16 %v73
    %v170 = vunpack.c.l.b16 %v74
    %v171 = vunpack.c.l.b16 %v75
    %v172 = vunpack.c.l.b16 %v76
    %v173 = vunpack.c.l.b16 %v77
    %v174 = vpack.c.b16 %v143, %v142
    %v175 = vpack.c.b16 %v145, %v144
    %v176 = vpack.c.b16 %v147, %v146
    %v177 = vpack.c.b16 %v149, %v148
    %v178 = vpack.c.b16 %v151, %v150
    %v179 = vpack.c.b16 %v153, %v152
    %v180 = vpack.c.b16 %v155, %v154
    %v181 = vpack.c.b16 %v157, %v156
    %v182 = vpack.c.b16 %v159, %v158
    %v183 = vpack.c.b16 %v161, %v160
    %v184 = vpack.c.b16 %v163, %v162
    %v185 = vpack.c.b16 %v165, %v164
    %v186 = vpack.c.b16 %v167, %v166
    %v187 = vpack.c.b16 %v169, %v168
    %v188 = vpack.c.b16 %v171, %v170
    %v189 = vpack.c.b16 %v173, %v172
    %v238 = vunpack.c.l.b16 %v78
    %v239 = vunpack.c.l.b16 %v79
    %v240 = vunpack.c.l.b16 %v80
    %v241 = vunpack.c.l.b16 %v81
    %v242 = vunpack.c.l.b16 %v82
    %v243 = vunpack.c.l.b16 %v83
    %v244 = vunpack.c.l.b16 %v84
    %v245 = vunpack.c.l.b16 %v85
    %v246 = vunpack.c.l.b16 %v86
    %v247 = vunpack.c.l.b16 %v87
    %v248 = vunpack.c.l.b16 %v88
    %v249 = vunpack.c.l.b16 %v89
    %v250 = vunpack.c.l.b16 %v90
    %v251 = vunpack.c.l.b16 %v91
    %v252 = vunpack.c.l.b16 %v92
    %v253 = vunpack.c.l.b16 %v93
    %v254 = vunpack.c.l.b16 %v94
    %v255 = vunpack.c.l.b16 %v95
    %v256 = vunpack.c.l.b16 %v96
    %v257 = vunpack.c.l.b16 %v97
    %v258 = vunpack.c.l.b16 %v98
    %v259 = vunpack.c.l.b16 %v99
    %v260 = vunpack.c.l.b16 %v100
    %v261 = vunpack.c.l.b16 %v101
    %v262 = vunpack.c.l.b16 %v102
    %v263 = vunpack.c.l.b16 %v103
    %v264 = vunpack.c.l.b16 %v104
    %v265 = vunpack.c.l.b16 %v105
    %v266 = vunpack.c.l.b16 %v106
    %v267 = vunpack.c.l.b16 %v107
    %v268 = vunpack.c.l.b16 %v108
    %v269 = vunpack.c.l.b16 %v109
    %v270 = vpack.c.b16 %v239, %v238
    %v271 = vpack.c.b16 %v241, %v240
    %v272 = vpack.c.b16 %v243, %v242
    %v273 = vpack.c.b16 %v245, %v244
    %v274 = vpack.c.b16 %v247, %v246
    %v275 = vpack.c.b16 %v249, %v248
    %v276 = vpack.c.b16 %v251, %v250
    %v277 = vpack.c.b16 %v253, %v252
    %v278 = vpack.c.b16 %v255, %v254
    %v279 = vpack.c.b16 %v257, %v256
    %v280 = vpack.c.b16 %v259, %v258
    %v281 = vpack.c.b16 %v261, %v260
    %v282 = vpack.c.b16 %v263, %v262
    %v283 = vpack.c.b16 %v265, %v264
    %v284 = vpack.c.b16 %v267, %v266
    %v285 = vpack.c.b16 %v269, %v268
    %302 = vmatpush.bf16.xpose.msra.mxu0 %v277
    %303 = vmatpush.bf16.xpose.msra.mxu0 %v276
    %304 = vmatpush.bf16.xpose.msra.mxu0 %v275
    %305 = vmatpush.bf16.xpose.msra.mxu0 %v274
    %306 = vmatpush.bf16.xpose.msra.mxu0 %v273
    %307 = vmatpush.bf16.xpose.msra.mxu0 %v272
    %308 = vmatpush.bf16.xpose.msra.mxu0 %v271
    %309 = vmatpush.bf16.xpose.msra.mxu0 %v270
    %310 = vmatmul.bf16.gmra.mxu0 %v174
    %v311 = vpop.f32.mrf.mxu0
    %v312 = vadd.f32 0.0, %v311
    %v313 = vpop.f32.mrf.mxu0
    %v314 = vadd.f32 0.0, %v313
    %315 = vmatmul.bf16.gmra.mxu0 %v175
    %v316 = vpop.f32.mrf.mxu0
    %v317 = vadd.f32 0.0, %v316
    %v318 = vpop.f32.mrf.mxu0
    %v319 = vadd.f32 0.0, %v318
    %320 = vmatmul.bf16.gmra.mxu0 %v176
    %v321 = vpop.f32.mrf.mxu0
    %v322 = vadd.f32 0.0, %v321
    %v323 = vpop.f32.mrf.mxu0
    %v324 = vadd.f32 0.0, %v323
    %325 = vmatmul.bf16.gmra.mxu0 %v177
    %v326 = vpop.f32.mrf.mxu0
    %v327 = vadd.f32 0.0, %v326
    %v328 = vpop.f32.mrf.mxu0
    %v329 = vadd.f32 0.0, %v328
    %330 = vmatmul.bf16.gmra.mxu0 %v178
    %v331 = vpop.f32.mrf.mxu0
    %v332 = vadd.f32 0.0, %v331
    %v333 = vpop.f32.mrf.mxu0
    %v334 = vadd.f32 0.0, %v333
    %335 = vmatmul.bf16.gmra.mxu0 %v179
    %v336 = vpop.f32.mrf.mxu0
    %v337 = vadd.f32 0.0, %v336
    %v338 = vpop.f32.mrf.mxu0
    %v339 = vadd.f32 0.0, %v338
    %340 = vmatmul.bf16.gmra.mxu0 %v180
    %v341 = vpop.f32.mrf.mxu0
    %v342 = vadd.f32 0.0, %v341
    %v343 = vpop.f32.mrf.mxu0
    %v344 = vadd.f32 0.0, %v343
    %345 = vmatmul.bf16.gmra.mxu0 %v181
    %v346 = vpop.f32.mrf.mxu0
    %v347 = vadd.f32 0.0, %v346
    %v348 = vpop.f32.mrf.mxu0
    %v349 = vadd.f32 0.0, %v348
    %350 = vmatmul.bf16.gmra.mxu0 %v182
    %v351 = vpop.f32.mrf.mxu0
    %v352 = vadd.f32 0.0, %v351
    %v353 = vpop.f32.mrf.mxu0
    %v354 = vadd.f32 0.0, %v353
    %355 = vmatmul.bf16.gmra.mxu0 %v183
    %v356 = vpop.f32.mrf.mxu0
    %v357 = vadd.f32 0.0, %v356
    %v358 = vpop.f32.mrf.mxu0
    %v359 = vadd.f32 0.0, %v358
    %360 = vmatmul.bf16.gmra.mxu0 %v184
    %v361 = vpop.f32.mrf.mxu0
    %v362 = vadd.f32 0.0, %v361
    %v363 = vpop.f32.mrf.mxu0
    %v364 = vadd.f32 0.0, %v363
    %365 = vmatmul.bf16.gmra.mxu0 %v185
    %v366 = vpop.f32.mrf.mxu0
    %v367 = vadd.f32 0.0, %v366
    %v368 = vpop.f32.mrf.mxu0
    %v369 = vadd.f32 0.0, %v368
    %370 = vmatmul.bf16.gmra.mxu0 %v186
    %v371 = vpop.f32.mrf.mxu0
    %v372 = vadd.f32 0.0, %v371
    %v373 = vpop.f32.mrf.mxu0
    %v374 = vadd.f32 0.0, %v373
    %375 = vmatmul.bf16.gmra.mxu0 %v187
    %v376 = vpop.f32.mrf.mxu0
    %v377 = vadd.f32 0.0, %v376
    %v378 = vpop.f32.mrf.mxu0
    %v379 = vadd.f32 0.0, %v378
    %380 = vmatmul.bf16.gmra.mxu0 %v188
    %v381 = vpop.f32.mrf.mxu0
    %v382 = vadd.f32 0.0, %v381
    %v383 = vpop.f32.mrf.mxu0
    %v384 = vadd.f32 0.0, %v383
    %385 = vmatmul.bf16.gmra.mxu0 %v189
    %v386 = vpop.f32.mrf.mxu0
    %v387 = vadd.f32 0.0, %v386
    %v388 = vpop.f32.mrf.mxu0
    %v389 = vadd.f32 0.0, %v388
    %390 = vdwg.mxu0
    %391 = vmatpush.bf16.xpose.msra.mxu0 %v285
    %392 = vmatpush.bf16.xpose.msra.mxu0 %v284
    %393 = vmatpush.bf16.xpose.msra.mxu0 %v283
    %394 = vmatpush.bf16.xpose.msra.mxu0 %v282
    %395 = vmatpush.bf16.xpose.msra.mxu0 %v281
    %396 = vmatpush.bf16.xpose.msra.mxu0 %v280
    %397 = vmatpush.bf16.xpose.msra.mxu0 %v279
    %398 = vmatpush.bf16.xpose.msra.mxu0 %v278
    %399 = vmatmul.bf16.gmra.mxu0 %v174
    %v400 = vpop.f32.mrf.mxu0
    %v401 = vadd.f32 0.0, %v400
    %v402 = vpop.f32.mrf.mxu0
    %v403 = vadd.f32 0.0, %v402
    %404 = vmatmul.bf16.gmra.mxu0 %v175
    %v405 = vpop.f32.mrf.mxu0
    %v406 = vadd.f32 0.0, %v405
    %v407 = vpop.f32.mrf.mxu0
    %v408 = vadd.f32 0.0, %v407
    %409 = vmatmul.bf16.gmra.mxu0 %v176
    %v410 = vpop.f32.mrf.mxu0
    %v411 = vadd.f32 0.0, %v410
    %v412 = vpop.f32.mrf.mxu0
    %v413 = vadd.f32 0.0, %v412
    %414 = vmatmul.bf16.gmra.mxu0 %v177
    %v415 = vpop.f32.mrf.mxu0
    %v416 = vadd.f32 0.0, %v415
    %v417 = vpop.f32.mrf.mxu0
    %v418 = vadd.f32 0.0, %v417
    %419 = vmatmul.bf16.gmra.mxu0 %v178
    %v420 = vpop.f32.mrf.mxu0
    %v421 = vadd.f32 0.0, %v420
    %v422 = vpop.f32.mrf.mxu0
    %v423 = vadd.f32 0.0, %v422
    %424 = vmatmul.bf16.gmra.mxu0 %v179
    %v425 = vpop.f32.mrf.mxu0
    %v426 = vadd.f32 0.0, %v425
    %v427 = vpop.f32.mrf.mxu0
    %v428 = vadd.f32 0.0, %v427
    %429 = vmatmul.bf16.gmra.mxu0 %v180
    %v430 = vpop.f32.mrf.mxu0
    %v431 = vadd.f32 0.0, %v430
    %v432 = vpop.f32.mrf.mxu0
    %v433 = vadd.f32 0.0, %v432
    %434 = vmatmul.bf16.gmra.mxu0 %v181
    %v435 = vpop.f32.mrf.mxu0
    %v436 = vadd.f32 0.0, %v435
    %v437 = vpop.f32.mrf.mxu0
    %v438 = vadd.f32 0.0, %v437
    %439 = vmatmul.bf16.gmra.mxu0 %v182
    %v440 = vpop.f32.mrf.mxu0
    %v441 = vadd.f32 0.0, %v440
    %v442 = vpop.f32.mrf.mxu0
    %v443 = vadd.f32 0.0, %v442
    %444 = vmatmul.bf16.gmra.mxu0 %v183
    %v445 = vpop.f32.mrf.mxu0
    %v446 = vadd.f32 0.0, %v445
    %v447 = vpop.f32.mrf.mxu0
    %v448 = vadd.f32 0.0, %v447
    %449 = vmatmul.bf16.gmra.mxu0 %v184
    %v450 = vpop.f32.mrf.mxu0
    %v451 = vadd.f32 0.0, %v450
    %v452 = vpop.f32.mrf.mxu0
    %v453 = vadd.f32 0.0, %v452
    %454 = vmatmul.bf16.gmra.mxu0 %v185
    %v455 = vpop.f32.mrf.mxu0
    %v456 = vadd.f32 0.0, %v455
    %v457 = vpop.f32.mrf.mxu0
    %v458 = vadd.f32 0.0, %v457
    %459 = vmatmul.bf16.gmra.mxu0 %v186
    %v460 = vpop.f32.mrf.mxu0
    %v461 = vadd.f32 0.0, %v460
    %v462 = vpop.f32.mrf.mxu0
    %v463 = vadd.f32 0.0, %v462
    %464 = vmatmul.bf16.gmra.mxu0 %v187
    %v465 = vpop.f32.mrf.mxu0
    %v466 = vadd.f32 0.0, %v465
    %v467 = vpop.f32.mrf.mxu0
    %v468 = vadd.f32 0.0, %v467
    %469 = vmatmul.bf16.gmra.mxu0 %v188
    %v470 = vpop.f32.mrf.mxu0
    %v471 = vadd.f32 0.0, %v470
    %v472 = vpop.f32.mrf.mxu0
    %v473 = vadd.f32 0.0, %v472
    %474 = vmatmul.bf16.gmra.mxu0 %v189
    %v475 = vpop.f32.mrf.mxu0
    %v476 = vadd.f32 0.0, %v475
    %v477 = vpop.f32.mrf.mxu0
    %v478 = vadd.f32 0.0, %v477
    %479 = vdwg.mxu0
    %v480 = vld [vmem:[%s3] sm:$0xff]
    %v481 = vld [vmem:[%s3 + $0x8] sm:$0xff]
    %v482 = vld [vmem:[%s3 + $0x10] sm:$0xff]
    %v483 = vld [vmem:[%s3 + $0x18] sm:$0xff]
    %v484 = vld [vmem:[%s3 + $0x20] sm:$0xff]
    %v485 = vld [vmem:[%s3 + $0x28] sm:$0xff]
    %v486 = vld [vmem:[%s3 + $0x30] sm:$0xff]
    %v487 = vld [vmem:[%s3 + $0x38] sm:$0xff]
    %v488 = vld [vmem:[%s3 + $0x40] sm:$0xff]
    %v489 = vld [vmem:[%s3 + $0x48] sm:$0xff]
    %v490 = vld [vmem:[%s3 + $0x50] sm:$0xff]
    %v491 = vld [vmem:[%s3 + $0x58] sm:$0xff]
    %v492 = vld [vmem:[%s3 + $0x60] sm:$0xff]
    %v493 = vld [vmem:[%s3 + $0x68] sm:$0xff]
    %v494 = vld [vmem:[%s3 + $0x70] sm:$0xff]
    %v495 = vld [vmem:[%s3 + $0x78] sm:$0xff]
    %v496 = vld [vmem:[%s3 + $0x80] sm:$0xff]
    %v497 = vld [vmem:[%s3 + $0x88] sm:$0xff]
    %v498 = vld [vmem:[%s3 + $0x90] sm:$0xff]
    %v499 = vld [vmem:[%s3 + $0x98] sm:$0xff]
    %v500 = vld [vmem:[%s3 + $0xa0] sm:$0xff]
    %v501 = vld [vmem:[%s3 + $0xa8] sm:$0xff]
    %v502 = vld [vmem:[%s3 + $0xb0] sm:$0xff]
    %v503 = vld [vmem:[%s3 + $0xb8] sm:$0xff]
    %v504 = vld [vmem:[%s3 + $0xc0] sm:$0xff]
    %v505 = vld [vmem:[%s3 + $0xc8] sm:$0xff]
    %v506 = vld [vmem:[%s3 + $0xd0] sm:$0xff]
    %v507 = vld [vmem:[%s3 + $0xd8] sm:$0xff]
    %v508 = vld [vmem:[%s3 + $0xe0] sm:$0xff]
    %v509 = vld [vmem:[%s3 + $0xe8] sm:$0xff]
    %v510 = vld [vmem:[%s3 + $0xf0] sm:$0xff]
    %v511 = vld [vmem:[%s3 + $0xf8] sm:$0xff]
    %513 = vset.pattern.permute.xlu0 0
    %514 = vperm.xlu0 %513, %v480
    %v515 = vpop.permute.xlu0 %514
    %518 = vset.pattern.permute.xlu0 0
    %519 = vperm.xlu0 %518, %v481
    %v520 = vpop.permute.xlu0 %519
    %523 = vset.pattern.permute.xlu0 0
    %524 = vperm.xlu0 %523, %v482
    %v525 = vpop.permute.xlu0 %524
    %528 = vset.pattern.permute.xlu0 0
    %529 = vperm.xlu0 %528, %v483
    %v530 = vpop.permute.xlu0 %529
    %533 = vset.pattern.permute.xlu0 0
    %534 = vperm.xlu0 %533, %v484
    %v535 = vpop.permute.xlu0 %534
    %538 = vset.pattern.permute.xlu0 0
    %539 = vperm.xlu0 %538, %v485
    %v540 = vpop.permute.xlu0 %539
    %543 = vset.pattern.permute.xlu0 0
    %544 = vperm.xlu0 %543, %v486
    %v545 = vpop.permute.xlu0 %544
    %548 = vset.pattern.permute.xlu0 0
    %549 = vperm.xlu0 %548, %v487
    %v550 = vpop.permute.xlu0 %549
    %553 = vset.pattern.permute.xlu0 0
    %554 = vperm.xlu0 %553, %v488
    %v555 = vpop.permute.xlu0 %554
    %558 = vset.pattern.permute.xlu0 0
    %559 = vperm.xlu0 %558, %v489
    %v560 = vpop.permute.xlu0 %559
    %563 = vset.pattern.permute.xlu0 0
    %564 = vperm.xlu0 %563, %v490
    %v565 = vpop.permute.xlu0 %564
    %568 = vset.pattern.permute.xlu0 0
    %569 = vperm.xlu0 %568, %v491
    %v570 = vpop.permute.xlu0 %569
    %573 = vset.pattern.permute.xlu0 0
    %574 = vperm.xlu0 %573, %v492
    %v575 = vpop.permute.xlu0 %574
    %578 = vset.pattern.permute.xlu0 0
    %579 = vperm.xlu0 %578, %v493
    %v580 = vpop.permute.xlu0 %579
    %583 = vset.pattern.permute.xlu0 0
    %584 = vperm.xlu0 %583, %v494
    %v585 = vpop.permute.xlu0 %584
    %588 = vset.pattern.permute.xlu0 0
    %589 = vperm.xlu0 %588, %v495
    %v590 = vpop.permute.xlu0 %589
    %593 = vset.pattern.permute.xlu0 0
    %594 = vperm.xlu0 %593, %v496
    %v595 = vpop.permute.xlu0 %594
    %598 = vset.pattern.permute.xlu0 0
    %599 = vperm.xlu0 %598, %v497
    %v600 = vpop.permute.xlu0 %599
    %603 = vset.pattern.permute.xlu0 0
    %604 = vperm.xlu0 %603, %v498
    %v605 = vpop.permute.xlu0 %604
    %608 = vset.pattern.permute.xlu0 0
    %609 = vperm.xlu0 %608, %v499
    %v610 = vpop.permute.xlu0 %609
    %613 = vset.pattern.permute.xlu0 0
    %614 = vperm.xlu0 %613, %v500
    %v615 = vpop.permute.xlu0 %614
    %618 = vset.pattern.permute.xlu0 0
    %619 = vperm.xlu0 %618, %v501
    %v620 = vpop.permute.xlu0 %619
    %623 = vset.pattern.permute.xlu0 0
    %624 = vperm.xlu0 %623, %v502
    %v625 = vpop.permute.xlu0 %624
    %628 = vset.pattern.permute.xlu0 0
    %629 = vperm.xlu0 %628, %v503
    %v630 = vpop.permute.xlu0 %629
    %633 = vset.pattern.permute.xlu0 0
    %634 = vperm.xlu0 %633, %v504
    %v635 = vpop.permute.xlu0 %634
    %638 = vset.pattern.permute.xlu0 0
    %639 = vperm.xlu0 %638, %v505
    %v640 = vpop.permute.xlu0 %639
    %643 = vset.pattern.permute.xlu0 0
    %644 = vperm.xlu0 %643, %v506
    %v645 = vpop.permute.xlu0 %644
    %648 = vset.pattern.permute.xlu0 0
    %649 = vperm.xlu0 %648, %v507
    %v650 = vpop.permute.xlu0 %649
    %653 = vset.pattern.permute.xlu0 0
    %654 = vperm.xlu0 %653, %v508
    %v655 = vpop.permute.xlu0 %654
    %658 = vset.pattern.permute.xlu0 0
    %659 = vperm.xlu0 %658, %v509
    %v660 = vpop.permute.xlu0 %659
    %663 = vset.pattern.permute.xlu0 0
    %664 = vperm.xlu0 %663, %v510
    %v665 = vpop.permute.xlu0 %664
    %668 = vset.pattern.permute.xlu0 0
    %669 = vperm.xlu0 %668, %v511
    %v670 = vpop.permute.xlu0 %669
    %v672 = vsub.f32 %v312, %v515
    %v673 = vsub.f32 %v401, %v515
    %v674 = vsub.f32 %v314, %v520
    %v675 = vsub.f32 %v403, %v520
    %v676 = vsub.f32 %v317, %v525
    %v677 = vsub.f32 %v406, %v525
    %v678 = vsub.f32 %v319, %v530
    %v679 = vsub.f32 %v408, %v530
    %v680 = vsub.f32 %v322, %v535
    %v681 = vsub.f32 %v411, %v535
    %v682 = vsub.f32 %v324, %v540
    %v683 = vsub.f32 %v413, %v540
    %v684 = vsub.f32 %v327, %v545
    %v685 = vsub.f32 %v416, %v545
    %v686 = vsub.f32 %v329, %v550
    %v687 = vsub.f32 %v418, %v550
    %v688 = vsub.f32 %v332, %v555
    %v689 = vsub.f32 %v421, %v555
    %v690 = vsub.f32 %v334, %v560
    %v691 = vsub.f32 %v423, %v560
    %v692 = vsub.f32 %v337, %v565
    %v693 = vsub.f32 %v426, %v565
    %v694 = vsub.f32 %v339, %v570
    %v695 = vsub.f32 %v428, %v570
    %v696 = vsub.f32 %v342, %v575
    %v697 = vsub.f32 %v431, %v575
    %v698 = vsub.f32 %v344, %v580
    %v699 = vsub.f32 %v433, %v580
    %v700 = vsub.f32 %v347, %v585
    %v701 = vsub.f32 %v436, %v585
    %v702 = vsub.f32 %v349, %v590
    %v703 = vsub.f32 %v438, %v590
    %v704 = vsub.f32 %v352, %v595
    %v705 = vsub.f32 %v441, %v595
    %v706 = vsub.f32 %v354, %v600
    %v707 = vsub.f32 %v443, %v600
    %v708 = vsub.f32 %v357, %v605
    %v709 = vsub.f32 %v446, %v605
    %v710 = vsub.f32 %v359, %v610
    %v711 = vsub.f32 %v448, %v610
    %v712 = vsub.f32 %v362, %v615
    %v713 = vsub.f32 %v451, %v615
    %v714 = vsub.f32 %v364, %v620
    %v715 = vsub.f32 %v453, %v620
    %v716 = vsub.f32 %v367, %v625
    %v717 = vsub.f32 %v456, %v625
    %v718 = vsub.f32 %v369, %v630
    %v719 = vsub.f32 %v458, %v630
    %v720 = vsub.f32 %v372, %v635
    %v721 = vsub.f32 %v461, %v635
    %v722 = vsub.f32 %v374, %v640
    %v723 = vsub.f32 %v463, %v640
    %v724 = vsub.f32 %v377, %v645
    %v725 = vsub.f32 %v466, %v645
    %v726 = vsub.f32 %v379, %v650
    %v727 = vsub.f32 %v468, %v650
    %v728 = vsub.f32 %v382, %v655
    %v729 = vsub.f32 %v471, %v655
    %v730 = vsub.f32 %v384, %v660
    %v731 = vsub.f32 %v473, %v660
    %v732 = vsub.f32 %v387, %v665
    %v733 = vsub.f32 %v476, %v665
    %v734 = vsub.f32 %v389, %v670
    %v735 = vsub.f32 %v478, %v670
    %v736 = vld [vmem:[#allocation3] sm:$0x3]
    %v738 = vperm.slane %v736, 0
    %v739 = vperm.slane %v736, 1
    %v742 = vsub.f32 %v672, %v738
    %v743 = vsub.f32 %v673, %v739
    %v744 = vsub.f32 %v674, %v738
    %v745 = vsub.f32 %v675, %v739
    %v746 = vsub.f32 %v676, %v738
    %v747 = vsub.f32 %v677, %v739
    %v748 = vsub.f32 %v678, %v738
    %v749 = vsub.f32 %v679, %v739
    %v750 = vsub.f32 %v680, %v738
    %v751 = vsub.f32 %v681, %v739
    %v752 = vsub.f32 %v682, %v738
    %v753 = vsub.f32 %v683, %v739
    %v754 = vsub.f32 %v684, %v738
    %v755 = vsub.f32 %v685, %v739
    %v756 = vsub.f32 %v686, %v738
    %v757 = vsub.f32 %v687, %v739
    %v758 = vsub.f32 %v688, %v738
    %v759 = vsub.f32 %v689, %v739
    %v760 = vsub.f32 %v690, %v738
    %v761 = vsub.f32 %v691, %v739
    %v762 = vsub.f32 %v692, %v738
    %v763 = vsub.f32 %v693, %v739
    %v764 = vsub.f32 %v694, %v738
    %v765 = vsub.f32 %v695, %v739
    %v766 = vsub.f32 %v696, %v738
    %v767 = vsub.f32 %v697, %v739
    %v768 = vsub.f32 %v698, %v738
    %v769 = vsub.f32 %v699, %v739
    %v770 = vsub.f32 %v700, %v738
    %v771 = vsub.f32 %v701, %v739
    %v772 = vsub.f32 %v702, %v738
    %v773 = vsub.f32 %v703, %v739
    %v774 = vsub.f32 %v704, %v738
    %v775 = vsub.f32 %v705, %v739
    %v776 = vsub.f32 %v706, %v738
    %v777 = vsub.f32 %v707, %v739
    %v778 = vsub.f32 %v708, %v738
    %v779 = vsub.f32 %v709, %v739
    %v780 = vsub.f32 %v710, %v738
    %v781 = vsub.f32 %v711, %v739
    %v782 = vsub.f32 %v712, %v738
    %v783 = vsub.f32 %v713, %v739
    %v784 = vsub.f32 %v714, %v738
    %v785 = vsub.f32 %v715, %v739
    %v786 = vsub.f32 %v716, %v738
    %v787 = vsub.f32 %v717, %v739
    %v788 = vsub.f32 %v718, %v738
    %v789 = vsub.f32 %v719, %v739
    %v790 = vsub.f32 %v720, %v738
    %v791 = vsub.f32 %v721, %v739
    %v792 = vsub.f32 %v722, %v738
    %v793 = vsub.f32 %v723, %v739
    %v794 = vsub.f32 %v724, %v738
    %v795 = vsub.f32 %v725, %v739
    %v796 = vsub.f32 %v726, %v738
    %v797 = vsub.f32 %v727, %v739
    %v798 = vsub.f32 %v728, %v738
    %v799 = vsub.f32 %v729, %v739
    %v800 = vsub.f32 %v730, %v738
    %v801 = vsub.f32 %v731, %v739
    %v802 = vsub.f32 %v732, %v738
    %v803 = vsub.f32 %v733, %v739
    %v804 = vsub.f32 %v734, %v738
    %v805 = vsub.f32 %v735, %v739
    %v806 = vmin.f32 %v742, 0.0
    %v807 = vmin.f32 %v743, 0.0
    %v808 = vmin.f32 %v744, 0.0
    %v809 = vmin.f32 %v745, 0.0
    %v810 = vmin.f32 %v746, 0.0
    %v811 = vmin.f32 %v747, 0.0
    %v812 = vmin.f32 %v748, 0.0
    %v813 = vmin.f32 %v749, 0.0
    %v814 = vmin.f32 %v750, 0.0
    %v815 = vmin.f32 %v751, 0.0
    %v816 = vmin.f32 %v752, 0.0
    %v817 = vmin.f32 %v753, 0.0
    %v818 = vmin.f32 %v754, 0.0
    %v819 = vmin.f32 %v755, 0.0
    %v820 = vmin.f32 %v756, 0.0
    %v821 = vmin.f32 %v757, 0.0
    %v822 = vmin.f32 %v758, 0.0
    %v823 = vmin.f32 %v759, 0.0
    %v824 = vmin.f32 %v760, 0.0
    %v825 = vmin.f32 %v761, 0.0
    %v826 = vmin.f32 %v762, 0.0
    %v827 = vmin.f32 %v763, 0.0
    %v828 = vmin.f32 %v764, 0.0
    %v829 = vmin.f32 %v765, 0.0
    %v830 = vmin.f32 %v766, 0.0
    %v831 = vmin.f32 %v767, 0.0
    %v832 = vmin.f32 %v768, 0.0
    %v833 = vmin.f32 %v769, 0.0
    %v834 = vmin.f32 %v770, 0.0
    %v835 = vmin.f32 %v771, 0.0
    %v836 = vmin.f32 %v772, 0.0
    %v837 = vmin.f32 %v773, 0.0
    %v838 = vmin.f32 %v774, 0.0
    %v839 = vmin.f32 %v775, 0.0
    %v840 = vmin.f32 %v776, 0.0
    %v841 = vmin.f32 %v777, 0.0
    %v842 = vmin.f32 %v778, 0.0
    %v843 = vmin.f32 %v779, 0.0
    %v844 = vmin.f32 %v780, 0.0
    %v845 = vmin.f32 %v781, 0.0
    %v846 = vmin.f32 %v782, 0.0
    %v847 = vmin.f32 %v783, 0.0
    %v848 = vmin.f32 %v784, 0.0
    %v849 = vmin.f32 %v785, 0.0
    %v850 = vmin.f32 %v786, 0.0
    %v851 = vmin.f32 %v787, 0.0
    %v852 = vmin.f32 %v788, 0.0
    %v853 = vmin.f32 %v789, 0.0
    %v854 = vmin.f32 %v790, 0.0
    %v855 = vmin.f32 %v791, 0.0
    %v856 = vmin.f32 %v792, 0.0
    %v857 = vmin.f32 %v793, 0.0
    %v858 = vmin.f32 %v794, 0.0
    %v859 = vmin.f32 %v795, 0.0
    %v860 = vmin.f32 %v796, 0.0
    %v861 = vmin.f32 %v797, 0.0
    %v862 = vmin.f32 %v798, 0.0
    %v863 = vmin.f32 %v799, 0.0
    %v864 = vmin.f32 %v800, 0.0
    %v865 = vmin.f32 %v801, 0.0
    %v866 = vmin.f32 %v802, 0.0
    %v867 = vmin.f32 %v803, 0.0
    %v868 = vmin.f32 %v804, 0.0
    %v869 = vmin.f32 %v805, 0.0
    %v870 = vpack.c.bf16 %v808, %v806
    %v871 = vpack.c.bf16 %v809, %v807
    %v872 = vpack.c.bf16 %v812, %v810
    %v873 = vpack.c.bf16 %v813, %v811
    %v874 = vpack.c.bf16 %v816, %v814
    %v875 = vpack.c.bf16 %v817, %v815
    %v876 = vpack.c.bf16 %v820, %v818
    %v877 = vpack.c.bf16 %v821, %v819
    %v878 = vpack.c.bf16 %v824, %v822
    %v879 = vpack.c.bf16 %v825, %v823
    %v880 = vpack.c.bf16 %v828, %v826
    %v881 = vpack.c.bf16 %v829, %v827
    %v882 = vpack.c.bf16 %v832, %v830
    %v883 = vpack.c.bf16 %v833, %v831
    %v884 = vpack.c.bf16 %v836, %v834
    %v885 = vpack.c.bf16 %v837, %v835
    %v886 = vpack.c.bf16 %v840, %v838
    %v887 = vpack.c.bf16 %v841, %v839
    %v888 = vpack.c.bf16 %v844, %v842
    %v889 = vpack.c.bf16 %v845, %v843
    %v890 = vpack.c.bf16 %v848, %v846
    %v891 = vpack.c.bf16 %v849, %v847
    %v892 = vpack.c.bf16 %v852, %v850
    %v893 = vpack.c.bf16 %v853, %v851
    %v894 = vpack.c.bf16 %v856, %v854
    %v895 = vpack.c.bf16 %v857, %v855
    %v896 = vpack.c.bf16 %v860, %v858
    %v897 = vpack.c.bf16 %v861, %v859
    %v898 = vpack.c.bf16 %v864, %v862
    %v899 = vpack.c.bf16 %v865, %v863
    %v900 = vpack.c.bf16 %v868, %v866
    %v901 = vpack.c.bf16 %v869, %v867
    %v902 = vunpack.c.l.bf16 %v870
    %v903 = vunpack.c.l.bf16 %v871
    %v904 = vunpack.c.h.bf16 %v870
    %v905 = vunpack.c.h.bf16 %v871
    %v906 = vunpack.c.l.bf16 %v872
    %v907 = vunpack.c.l.bf16 %v873
    %v908 = vunpack.c.h.bf16 %v872
    %v909 = vunpack.c.h.bf16 %v873
    %v910 = vunpack.c.l.bf16 %v874
    %v911 = vunpack.c.l.bf16 %v875
    %v912 = vunpack.c.h.bf16 %v874
    %v913 = vunpack.c.h.bf16 %v875
    %v914 = vunpack.c.l.bf16 %v876
    %v915 = vunpack.c.l.bf16 %v877
    %v916 = vunpack.c.h.bf16 %v876
    %v917 = vunpack.c.h.bf16 %v877
    %v918 = vunpack.c.l.bf16 %v878
    %v919 = vunpack.c.l.bf16 %v879
    %v920 = vunpack.c.h.bf16 %v878
    %v921 = vunpack.c.h.bf16 %v879
    %v922 = vunpack.c.l.bf16 %v880
    %v923 = vunpack.c.l.bf16 %v881
    %v924 = vunpack.c.h.bf16 %v880
    %v925 = vunpack.c.h.bf16 %v881
    %v926 = vunpack.c.l.bf16 %v882
    %v927 = vunpack.c.l.bf16 %v883
    %v928 = vunpack.c.h.bf16 %v882
    %v929 = vunpack.c.h.bf16 %v883
    %v930 = vunpack.c.l.bf16 %v884
    %v931 = vunpack.c.l.bf16 %v885
    %v932 = vunpack.c.h.bf16 %v884
    %v933 = vunpack.c.h.bf16 %v885
    %v934 = vunpack.c.l.bf16 %v886
    %v935 = vunpack.c.l.bf16 %v887
    %v936 = vunpack.c.h.bf16 %v886
    %v937 = vunpack.c.h.bf16 %v887
    %v938 = vunpack.c.l.bf16 %v888
    %v939 = vunpack.c.l.bf16 %v889
    %v940 = vunpack.c.h.bf16 %v888
    %v941 = vunpack.c.h.bf16 %v889
    %v942 = vunpack.c.l.bf16 %v890
    %v943 = vunpack.c.l.bf16 %v891
    %v944 = vunpack.c.h.bf16 %v890
    %v945 = vunpack.c.h.bf16 %v891
    %v946 = vunpack.c.l.bf16 %v892
    %v947 = vunpack.c.l.bf16 %v893
    %v948 = vunpack.c.h.bf16 %v892
    %v949 = vunpack.c.h.bf16 %v893
    %v950 = vunpack.c.l.bf16 %v894
    %v951 = vunpack.c.l.bf16 %v895
    %v952 = vunpack.c.h.bf16 %v894
    %v953 = vunpack.c.h.bf16 %v895
    %v954 = vunpack.c.l.bf16 %v896
    %v955 = vunpack.c.l.bf16 %v897
    %v956 = vunpack.c.h.bf16 %v896
    %v957 = vunpack.c.h.bf16 %v897
    %v958 = vunpack.c.l.bf16 %v898
    %v959 = vunpack.c.l.bf16 %v899
    %v960 = vunpack.c.h.bf16 %v898
    %v961 = vunpack.c.h.bf16 %v899
    %v962 = vunpack.c.l.bf16 %v900
    %v963 = vunpack.c.l.bf16 %v901
    %v964 = vunpack.c.h.bf16 %v900
    %v965 = vunpack.c.h.bf16 %v901
    %v966 = vmul.f32 %v902, 1.442695
    %v967 = vpow.pop %v966
    %v968 = vmul.f32 %v903, 1.442695
    %v969 = vpow.pop %v968
    %v970 = vmul.f32 %v904, 1.442695
    %v971 = vpow.pop %v970
    %v972 = vmul.f32 %v905, 1.442695
    %v973 = vpow.pop %v972
    %v974 = vmul.f32 %v906, 1.442695
    %v975 = vpow.pop %v974
    %v976 = vmul.f32 %v907, 1.442695
    %v977 = vpow.pop %v976
    %v978 = vmul.f32 %v908, 1.442695
    %v979 = vpow.pop %v978
    %v980 = vmul.f32 %v909, 1.442695
    %v981 = vpow.pop %v980
    %v982 = vmul.f32 %v910, 1.442695
    %v983 = vpow.pop %v982
    %v984 = vmul.f32 %v911, 1.442695
    %v985 = vpow.pop %v984
    %v986 = vmul.f32 %v912, 1.442695
    %v987 = vpow.pop %v986
    %v988 = vmul.f32 %v913, 1.442695
    %v989 = vpow.pop %v988
    %v990 = vmul.f32 %v914, 1.442695
    %v991 = vpow.pop %v990
    %v992 = vmul.f32 %v915, 1.442695
    %v993 = vpow.pop %v992
    %v994 = vmul.f32 %v916, 1.442695
    %v995 = vpow.pop %v994
    %v996 = vmul.f32 %v917, 1.442695
    %v997 = vpow.pop %v996
    %v998 = vmul.f32 %v918, 1.442695
    %v999 = vpow.pop %v998
    %v1000 = vmul.f32 %v919, 1.442695
    %v1001 = vpow.pop %v1000
    %v1002 = vmul.f32 %v920, 1.442695
    %v1003 = vpow.pop %v1002
    %v1004 = vmul.f32 %v921, 1.442695
    %v1005 = vpow.pop %v1004
    %v1006 = vmul.f32 %v922, 1.442695
    %v1007 = vpow.pop %v1006
    %v1008 = vmul.f32 %v923, 1.442695
    %v1009 = vpow.pop %v1008
    %v1010 = vmul.f32 %v924, 1.442695
    %v1011 = vpow.pop %v1010
    %v1012 = vmul.f32 %v925, 1.442695
    %v1013 = vpow.pop %v1012
    %v1014 = vmul.f32 %v926, 1.442695
    %v1015 = vpow.pop %v1014
    %v1016 = vmul.f32 %v927, 1.442695
    %v1017 = vpow.pop %v1016
    %v1018 = vmul.f32 %v928, 1.442695
    %v1019 = vpow.pop %v1018
    %v1020 = vmul.f32 %v929, 1.442695
    %v1021 = vpow.pop %v1020
    %v1022 = vmul.f32 %v930, 1.442695
    %v1023 = vpow.pop %v1022
    %v1024 = vmul.f32 %v931, 1.442695
    %v1025 = vpow.pop %v1024
    %v1026 = vmul.f32 %v932, 1.442695
    %v1027 = vpow.pop %v1026
    %v1028 = vmul.f32 %v933, 1.442695
    %v1029 = vpow.pop %v1028
    %v1030 = vmul.f32 %v934, 1.442695
    %v1031 = vpow.pop %v1030
    %v1032 = vmul.f32 %v935, 1.442695
    %v1033 = vpow.pop %v1032
    %v1034 = vmul.f32 %v936, 1.442695
    %v1035 = vpow.pop %v1034
    %v1036 = vmul.f32 %v937, 1.442695
    %v1037 = vpow.pop %v1036
    %v1038 = vmul.f32 %v938, 1.442695
    %v1039 = vpow.pop %v1038
    %v1040 = vmul.f32 %v939, 1.442695
    %v1041 = vpow.pop %v1040
    %v1042 = vmul.f32 %v940, 1.442695
    %v1043 = vpow.pop %v1042
    %v1044 = vmul.f32 %v941, 1.442695
    %v1045 = vpow.pop %v1044
    %v1046 = vmul.f32 %v942, 1.442695
    %v1047 = vpow.pop %v1046
    %v1048 = vmul.f32 %v943, 1.442695
    %v1049 = vpow.pop %v1048
    %v1050 = vmul.f32 %v944, 1.442695
    %v1051 = vpow.pop %v1050
    %v1052 = vmul.f32 %v945, 1.442695
    %v1053 = vpow.pop %v1052
    %v1054 = vmul.f32 %v946, 1.442695
    %v1055 = vpow.pop %v1054
    %v1056 = vmul.f32 %v947, 1.442695
    %v1057 = vpow.pop %v1056
    %v1058 = vmul.f32 %v948, 1.442695
    %v1059 = vpow.pop %v1058
    %v1060 = vmul.f32 %v949, 1.442695
    %v1061 = vpow.pop %v1060
    %v1062 = vmul.f32 %v950, 1.442695
    %v1063 = vpow.pop %v1062
    %v1064 = vmul.f32 %v951, 1.442695
    %v1065 = vpow.pop %v1064
    %v1066 = vmul.f32 %v952, 1.442695
    %v1067 = vpow.pop %v1066
    %v1068 = vmul.f32 %v953, 1.442695
    %v1069 = vpow.pop %v1068
    %v1070 = vmul.f32 %v954, 1.442695
    %v1071 = vpow.pop %v1070
    %v1072 = vmul.f32 %v955, 1.442695
    %v1073 = vpow.pop %v1072
    %v1074 = vmul.f32 %v956, 1.442695
    %v1075 = vpow.pop %v1074
    %v1076 = vmul.f32 %v957, 1.442695
    %v1077 = vpow.pop %v1076
    %v1078 = vmul.f32 %v958, 1.442695
    %v1079 = vpow.pop %v1078
    %v1080 = vmul.f32 %v959, 1.442695
    %v1081 = vpow.pop %v1080
    %v1082 = vmul.f32 %v960, 1.442695
    %v1083 = vpow.pop %v1082
    %v1084 = vmul.f32 %v961, 1.442695
    %v1085 = vpow.pop %v1084
    %v1086 = vmul.f32 %v962, 1.442695
    %v1087 = vpow.pop %v1086
    %v1088 = vmul.f32 %v963, 1.442695
    %v1089 = vpow.pop %v1088
    %v1090 = vmul.f32 %v964, 1.442695
    %v1091 = vpow.pop %v1090
    %v1092 = vmul.f32 %v965, 1.442695
    %v1093 = vpow.pop %v1092
    %v1094 = vpack.c.bf16 %v971, %v967
    %v1095 = vpack.c.bf16 %v973, %v969
    %v1096 = vpack.c.bf16 %v979, %v975
    %v1097 = vpack.c.bf16 %v981, %v977
    %v1098 = vpack.c.bf16 %v987, %v983
    %v1099 = vpack.c.bf16 %v989, %v985
    %v1100 = vpack.c.bf16 %v995, %v991
    %v1101 = vpack.c.bf16 %v997, %v993
    %v1102 = vpack.c.bf16 %v1003, %v999
    %v1103 = vpack.c.bf16 %v1005, %v1001
    %v1104 = vpack.c.bf16 %v1011, %v1007
    %v1105 = vpack.c.bf16 %v1013, %v1009
    %v1106 = vpack.c.bf16 %v1019, %v1015
    %v1107 = vpack.c.bf16 %v1021, %v1017
    %v1108 = vpack.c.bf16 %v1027, %v1023
    %v1109 = vpack.c.bf16 %v1029, %v1025
    %v1110 = vpack.c.bf16 %v1035, %v1031
    %v1111 = vpack.c.bf16 %v1037, %v1033
    %v1112 = vpack.c.bf16 %v1043, %v1039
    %v1113 = vpack.c.bf16 %v1045, %v1041
    %v1114 = vpack.c.bf16 %v1051, %v1047
    %v1115 = vpack.c.bf16 %v1053, %v1049
    %v1116 = vpack.c.bf16 %v1059, %v1055
    %v1117 = vpack.c.bf16 %v1061, %v1057
    %v1118 = vpack.c.bf16 %v1067, %v1063
    %v1119 = vpack.c.bf16 %v1069, %v1065
    %v1120 = vpack.c.bf16 %v1075, %v1071
    %v1121 = vpack.c.bf16 %v1077, %v1073
    %v1122 = vpack.c.bf16 %v1083, %v1079
    %v1123 = vpack.c.bf16 %v1085, %v1081
    %v1124 = vpack.c.bf16 %v1091, %v1087
    %v1125 = vpack.c.bf16 %v1093, %v1089
    %v1126 = vld [vmem:[#allocation2] sm:$0xff]
    %v1127 = vld [vmem:[#allocation2 + $0x8] sm:$0xff]
    %v1128 = vld [vmem:[#allocation2 + $0x10] sm:$0xff]
    %v1129 = vld [vmem:[#allocation2 + $0x18] sm:$0xff]
    %v1130 = vld [vmem:[%s4] sm:$0xff]
    %v1131 = vld [vmem:[%s4 + $0x8] sm:$0xff]
    %v1134 = vunpack.c.l.b16 %v1130
    %v1135 = vunpack.c.h.b16 %v1130
    %v1136 = vunpack.c.l.b16 %v1131
    %v1137 = vunpack.c.h.b16 %v1131
    %v1138 = vpack.c.b16 %v1136, %v1134
    %v1139 = vpack.c.b16 %v1137, %v1135
    %1142 = vmatpush.bf16.msra.mxu0 %v1108
    %1143 = vmatpush.bf16.msra.mxu0 %v1106
    %1144 = vmatpush.bf16.msra.mxu0 %v1104
    %1145 = vmatpush.bf16.msra.mxu0 %v1102
    %1146 = vmatpush.bf16.msra.mxu0 %v1100
    %1147 = vmatpush.bf16.msra.mxu0 %v1098
    %1148 = vmatpush.bf16.msra.mxu0 %v1096
    %1149 = vmatpush.bf16.msra.mxu0 %v1094
    %1150 = vmatmul.bf16.gmra.mxu0 %v1138
    %v1151 = vpop.f32.mrf.mxu0
    %v1152 = vadd.f32 0.0, %v1151
    %v1153 = vpop.f32.mrf.mxu0
    %v1154 = vadd.f32 0.0, %v1153
    %1155 = vdwg.mxu0
    %1156 = vmatpush.bf16.msra.mxu0 %v1124
    %1157 = vmatpush.bf16.msra.mxu0 %v1122
    %1158 = vmatpush.bf16.msra.mxu0 %v1120
    %1159 = vmatpush.bf16.msra.mxu0 %v1118
    %1160 = vmatpush.bf16.msra.mxu0 %v1116
    %1161 = vmatpush.bf16.msra.mxu0 %v1114
    %1162 = vmatpush.bf16.msra.mxu0 %v1112
    %1163 = vmatpush.bf16.msra.mxu0 %v1110
    %1164 = vmatmul.bf16.gmra.mxu0 %v1139
    %v1165 = vpop.f32.mrf.mxu0
    %v1166 = vadd.f32 %v1152, %v1165
    %v1167 = vpop.f32.mrf.mxu0
    %v1168 = vadd.f32 %v1154, %v1167
    %1169 = vdwg.mxu0
    %1170 = vmatpush.bf16.msra.mxu0 %v1109
    %1171 = vmatpush.bf16.msra.mxu0 %v1107
    %1172 = vmatpush.bf16.msra.mxu0 %v1105
    %1173 = vmatpush.bf16.msra.mxu0 %v1103
    %1174 = vmatpush.bf16.msra.mxu0 %v1101
    %1175 = vmatpush.bf16.msra.mxu0 %v1099
    %1176 = vmatpush.bf16.msra.mxu0 %v1097
    %1177 = vmatpush.bf16.msra.mxu0 %v1095
    %1178 = vmatmul.bf16.gmra.mxu0 %v1138
    %v1179 = vpop.f32.mrf.mxu0
    %v1180 = vadd.f32 0.0, %v1179
    %v1181 = vpop.f32.mrf.mxu0
    %v1182 = vadd.f32 0.0, %v1181
    %1183 = vdwg.mxu0
    %1184 = vmatpush.bf16.msra.mxu0 %v1125
    %1185 = vmatpush.bf16.msra.mxu0 %v1123
    %1186 = vmatpush.bf16.msra.mxu0 %v1121
    %1187 = vmatpush.bf16.msra.mxu0 %v1119
    %1188 = vmatpush.bf16.msra.mxu0 %v1117
    %1189 = vmatpush.bf16.msra.mxu0 %v1115
    %1190 = vmatpush.bf16.msra.mxu0 %v1113
    %1191 = vmatpush.bf16.msra.mxu0 %v1111
    %1192 = vmatmul.bf16.gmra.mxu0 %v1139
    %v1193 = vpop.f32.mrf.mxu0
    %v1194 = vadd.f32 %v1180, %v1193
    %v1195 = vpop.f32.mrf.mxu0
    %v1196 = vadd.f32 %v1182, %v1195
    %1197 = vdwg.mxu0
    %v1198 = vadd.f32 %v1126, %v1166
    %v1199 = vadd.f32 %v1127, %v1194
    %v1200 = vadd.f32 %v1128, %v1168
    %v1201 = vadd.f32 %v1129, %v1196
    %1202 = vst [vmem:[#allocation2] sm:$0xff] %v1198
    %1203 = vst [vmem:[#allocation2 + $0x8] sm:$0xff] %v1199
    %1204 = vst [vmem:[#allocation2 + $0x10] sm:$0xff] %v1200
    %1205 = vst [vmem:[#allocation2 + $0x18] sm:$0xff] %v1201
    // Predicated region
    $region34: #{tpu_custom_call.1} parent=1 // pred_check
      %p1206 = pneg %p38
    $region35: #{tpu_custom_call.1} parent=1 // pred_check_branch
      %1208 = sbr.rel (%p1206) target = $region37
    $region36: #{tpu_custom_call.1} parent=1 // pred_region
      %v1209 = vld [vmem:[#allocation2] sm:$0xff]
      %v1210 = vld [vmem:[#allocation2 + $0x8] sm:$0xff]
      %v1211 = vld [vmem:[#allocation2 + $0x10] sm:$0xff]
      %v1212 = vld [vmem:[#allocation2 + $0x18] sm:$0xff]
      %v1213 = vld [vmem:[%s5] sm:$0xff]
      %v1214 = vld [vmem:[%s5 + $0x8] sm:$0xff]
      %1216 = vset.pattern.permute.xlu0 0
      %1217 = vperm.xlu0 %1216, %v1213
      %v1218 = vpop.permute.xlu0 %1217
      %1221 = vset.pattern.permute.xlu0 0
      %1222 = vperm.xlu0 %1221, %v1214
      %v1223 = vpop.permute.xlu0 %1222
      %v1225 = vadd.f32 %v1209, %v1218
      %v1226 = vadd.f32 %v1210, %v1218
      %v1227 = vadd.f32 %v1211, %v1223
      %v1228 = vadd.f32 %v1212, %v1223
      %1229 = vst [vmem:[#allocation6] sm:$0xff] %v1225
      %1230 = vst [vmem:[#allocation6 + $0x8] sm:$0xff] %v1226
      %1231 = vst [vmem:[#allocation6 + $0x10] sm:$0xff] %v1227
      %1232 = vst [vmem:[#allocation6 + $0x18] sm:$0xff] %v1228
    $region37: #{tpu_custom_call.1} parent=1 // pred_fallthru
      _
    // Predicated region
    $region38: #{tpu_custom_call.1} parent=1 // pred_check
      _
    $region39: #{tpu_custom_call.1} parent=1 // pred_check_branch
      %1234 = sbr.rel (0) target = $region41
    $region40: #{tpu_custom_call.1} parent=1 // pred_region
      %1236 = vsyncadd [#allocation5], 0
      %s1237 = sshll.u32 [#allocation6], 4
      %s1238 = int_to_ptr.vmem [resolvable:$true] %s1237
      %s1239 = sshll.u32 %s6, 4
      %s1240 = int_to_ptr.hbm [resolvable:$true] %s1239
      %1245 = dma.vmem_to_hbm [thread:$0]  %s1238, 512, %s1240, [#allocation5], 256, 256, 16
    $region41: #{tpu_custom_call.1} parent=1 // pred_fallthru
      _
    // Predicated region
    $region42: #{tpu_custom_call.1} parent=1 // pred_check
      _
    $region43: #{tpu_custom_call.1} parent=1 // pred_check_branch
      %1247 = sbr.rel (0) target = $region45
    $region44: #{tpu_custom_call.1} parent=1 // pred_region
      %1249 = dma.done [#allocation5], 512
    $region45: #{tpu_custom_call.1} parent=1 // pred_fallthru
      _
    %1250 = vsyncpa [#allocation4], 1
    %1251 = vsyncpa [#allocation5], 1

</llo_original>
